<compile_context>
chip_gen: v5e
topology: v5e:2x2
jax: 0.10.0
libtpu: 0.0.40
codegen_flags: <defaults>
</compile_context>

<pallas_src>
import functools

import jax
import jax.numpy as jnp
from jax import lax
from jax.experimental import pallas as pl
from jax.experimental.pallas import tpu as pltpu


_LANE = 128                          # lane-dense channel padding for conv outputs
_VMEM_LIMIT = 48 * 1024 * 1024       # leave headroom on v7x (64 MiB / TC)


def _round_up(v, m):
    return (v + m - 1) // m * m


def _pick_th(ho, wo, cp, *, max_rows=512, max_bytes=2 * 1024 * 1024):
    """Largest divisor of `ho` whose (th, wo, cp) f32 tile stays modest."""
    best = 1
    for d in range(1, ho + 1):
        if ho % d == 0 and d * wo <= max_rows and d * wo * cp * 4 <= max_bytes:
            best = d
    return best


# ---------------------------------------------------------------------------
# Pallas kernels
# ---------------------------------------------------------------------------
def _conv_stats_kernel(x_ref, w_ref, y_ref, st_ref, *, stride, th, wo, hh, cp):
    """3x3 conv as 9 accumulating MXU matmuls + per-tile BN partial stats.

    x_ref : (1, P*Hh, Wh, Cin_p) padded (and, for stride=2, parity-split)
            input for one image; resident across the row-band grid axis.
    w_ref : (9, Cin_p, Cp)  tap-major weight matrix (lane-dense Cp).
    y_ref : (1, th, wo, Cp) un-normalized conv output tile.
    st_ref: (1, 1, 2, Cp)   [sum, sum-of-squares] over this tile's rows.
    """
    s = stride
    band = pl.program_id(1)
    m = th * wo
    acc = jnp.zeros((m, cp), jnp.float32)
    for dy in range(3):
        for dx in range(3):
            ph = (dy % s) * s + (dx % s)           # parity phase (0 when s == 1)
            r0 = ph * hh + band * th + dy // s     # dynamic row start
            c0 = dx // s                           # static column start
            v = x_ref[0, pl.ds(r0, th), pl.ds(c0, wo), :]
            acc = acc + jnp.dot(v.reshape(m, v.shape[-1]), w_ref[dy * 3 + dx],
                                preferred_element_type=jnp.float32)
    y_ref[...] = acc.reshape(1, th, wo, cp)
    ssum = jnp.sum(acc, axis=0, keepdims=True)
    ssq = jnp.sum(acc * acc, axis=0, keepdims=True)
    st_ref[...] = jnp.concatenate([ssum, ssq], axis=0).reshape(1, 1, 2, cp)


def _bn_act_kernel(y_ref, sc_ref, sh_ref, o_ref, *, relu):
    y = y_ref[...] * sc_ref[0, :] + sh_ref[0, :]
    if relu:
        y = jnp.maximum(y, 0.0)
    o_ref[...] = y


def _bn_add_relu_kernel(y_ref, sc_ref, sh_ref, r_ref, rsc_ref, rsh_ref, o_ref):
    # Fused: BN(main) + BN(residual) + add + ReLU in one lane-dense pass.
    a = y_ref[...] * sc_ref[0, :] + sh_ref[0, :]
    b = r_ref[...] * rsc_ref[0, :] + rsh_ref[0, :]
    o_ref[...] = jnp.maximum(a + b, 0.0)


# ---------------------------------------------------------------------------
# Host-side layout plumbing (single pad / parity split; no im2col)
# ---------------------------------------------------------------------------
def _prep_input(x_nhwc, stride):
    """Channel-pad to a multiple of 8, spatial pad by 1, parity-split if s=2."""
    n, h, w, c = x_nhwc.shape
    cin_p = _round_up(c, 8)
    x = jnp.pad(x_nhwc, ((0, 0), (0, 0), (0, 0), (0, cin_p - c)))
    xp = jnp.pad(x, ((0, 0), (1, 1), (1, 1), (0, 0)))
    ho = (h - 1) // stride + 1
    wo = (w - 1) // stride + 1
    if stride == 1:
        return xp, cin_p, ho, wo, h + 2
    # stride == 2: space-to-depth by row/col parity so every in-kernel tap is
    # a plain contiguous slice of phase (dy % 2) * 2 + (dx % 2).
    hp, wp = h + 2, w + 2
    hh, wh = (hp + 1) // 2, (wp + 1) // 2
    xp = jnp.pad(xp, ((0, 0), (0, 2 * hh - hp), (0, 2 * wh - wp), (0, 0)))
    x_ph = (xp.reshape(n, hh, 2, wh, 2, cin_p)
              .transpose(0, 2, 4, 1, 3, 5)          # (N, pr, pc, Hh, Wh, C)
              .reshape(n, 4 * hh, wh, cin_p))
    return x_ph, cin_p, ho, wo, hh


def _prep_weight(w_oihw, cin_p, cp):
    cout, cin = w_oihw.shape[0], w_oihw.shape[1]
    wm = jnp.transpose(w_oihw, (2, 3, 1, 0)).astype(jnp.float32)   # (3,3,Ci,Co)
    wm = jnp.pad(wm, ((0, 0), (0, 0), (0, cin_p - cin), (0, cp - cout)))
    return wm.reshape(9, cin_p, cp)


# ---------------------------------------------------------------------------
# conv3x3 + BN building blocks
# ---------------------------------------------------------------------------
def _conv3x3_bn_parts(x_nhwc, w_oihw, gamma, beta, *, stride, cp, eps=1e-5):
    """Returns (un-normalized conv output y, folded BN scale, folded BN shift)."""
    n = x_nhwc.shape[0]
    cout = w_oihw.shape[0]
    # TODO(synk): for very large H*W, replace the per-image-resident input with
    # a manual halo-DMA double buffer so VMEM stays bounded independent of H*W.
    x_ph, cin_p, ho, wo, hh = _prep_input(x_nhwc, stride)
    wmat = _prep_weight(w_oihw, cin_p, cp)
    th = _pick_th(ho, wo, cp)
    n_hblk = ho // th

    kernel = functools.partial(_conv_stats_kernel, stride=stride, th=th,
                               wo=wo, hh=hh, cp=cp)
    flops = 2 * n * ho * wo * 9 * cin_p * cp
    bytes_accessed = 4 * (x_ph.size + wmat.size + n * ho * wo * cp)
    y, st = pl.pallas_call(
        kernel,
        out_shape=(jax.ShapeDtypeStruct((n, ho, wo, cp), jnp.float32),
                   jax.ShapeDtypeStruct((n, n_hblk, 2, cp), jnp.float32)),
        grid=(n, n_hblk),
        in_specs=[
            pl.BlockSpec((1,) + x_ph.shape[1:], lambda i, j: (i, 0, 0, 0)),
            pl.BlockSpec(wmat.shape, lambda i, j: (0, 0, 0)),
        ],
        out_specs=(
            pl.BlockSpec((1, th, wo, cp), lambda i, j: (i, j, 0, 0)),
            pl.BlockSpec((1, 1, 2, cp), lambda i, j: (i, j, 0, 0)),
        ),
        compiler_params=pltpu.CompilerParams(
            dimension_semantics=("parallel", "parallel"),
            vmem_limit_bytes=_VMEM_LIMIT),
        cost_estimate=pl.CostEstimate(flops=flops, transcendentals=0,
                                      bytes_accessed=bytes_accessed),
    )(x_ph, wmat)

    # Combine per-tile partials -> exact full-batch BN statistics (train mode,
    # biased variance), then fold gamma/beta into a per-channel scale/shift.
    count = float(n * ho * wo)
    tot = jnp.sum(st, axis=(0, 1))                     # (2, Cp)
    mean = tot[0] / count
    var = jnp.maximum(tot[1] / count - mean * mean, 0.0)
    inv = lax.rsqrt(var + eps)
    g = jnp.pad(gamma.astype(jnp.float32), (0, cp - cout))
    b = jnp.pad(beta.astype(jnp.float32), (0, cp - cout))
    scale = (g * inv).reshape(1, cp)
    shift = (b - mean * g * inv).reshape(1, cp)
    return y, scale, shift


def _epilogue_specs(shape):
    n, ho, wo, cp = shape
    th = _pick_th(ho, wo, cp)
    blk = pl.BlockSpec((1, th, wo, cp), lambda i, j: (i, j, 0, 0))
    vec = pl.BlockSpec((1, cp), lambda i, j: (0, 0))
    return (n, ho // th), blk, vec


def _bn_epilogue(y, scale, shift, *, relu):
    grid, blk, vec = _epilogue_specs(y.shape)
    return pl.pallas_call(
        functools.partial(_bn_act_kernel, relu=relu),
        out_shape=jax.ShapeDtypeStruct(y.shape, jnp.float32),
        grid=grid,
        in_specs=[blk, vec, vec],
        out_specs=blk,
        compiler_params=pltpu.CompilerParams(
            dimension_semantics=("parallel", "parallel"),
            vmem_limit_bytes=_VMEM_LIMIT),
    )(y, scale, shift)


def _bn_add_relu(y, sc, sh, r, rsc, rsh):
    grid, blk, vec = _epilogue_specs(y.shape)
    return pl.pallas_call(
        _bn_add_relu_kernel,
        out_shape=jax.ShapeDtypeStruct(y.shape, jnp.float32),
        grid=grid,
        in_specs=[blk, vec, vec, blk, vec, vec],
        out_specs=blk,
        compiler_params=pltpu.CompilerParams(
            dimension_semantics=("parallel", "parallel"),
            vmem_limit_bytes=_VMEM_LIMIT),
    )(y, sc, sh, r, rsc, rsh)


# ---------------------------------------------------------------------------
# Public wrappers
# ---------------------------------------------------------------------------
def pallas_conv3x3_bn(x_nchw, w_oihw, gamma, beta, *, stride, relu, eps=1e-5):
    """conv3x3(pad=1, no bias) + BatchNorm2d(train) [+ReLU], NCHW in/out."""
    cout = w_oihw.shape[0]
    cp = _round_up(cout, _LANE)
    x = jnp.transpose(x_nchw, (0, 2, 3, 1)).astype(jnp.float32)
    y, scale, shift = _conv3x3_bn_parts(x, w_oihw, gamma, beta,
                                        stride=stride, cp=cp, eps=eps)
    out = _bn_epilogue(y, scale, shift, relu=relu)
    return jnp.transpose(out[..., :cout], (0, 3, 1, 2))


def convolution_block_2_forward(x_nchw, p, eps=1e-5):
    """Forward of Convolution_block_2 (training-mode BatchNorm)."""
    cout = p["w1"].shape[0]
    cp = _round_up(cout, _LANE)
    # single NCHW -> NHWC transpose for the whole block
    x = jnp.transpose(x_nchw, (0, 2, 3, 1)).astype(jnp.float32)

    # main branch: conv3x3(stride=2) -> BN -> ReLU
    y1, sc1, sh1 = _conv3x3_bn_parts(x, p["w1"], p["g1"], p["b1"],
                                     stride=2, cp=cp, eps=eps)
    h1 = _bn_epilogue(y1, sc1, sh1, relu=True)               # (N, Ho1, Wo1, Cp)

    # main branch: conv3x3(stride=1) -> BN (normalization deferred to the fused kernel)
    y2, sc2, sh2 = _conv3x3_bn_parts(h1, p["w2"], p["g2"], p["b2"],
                                     stride=1, cp=cp, eps=eps)

    # residual branch: conv3x3(stride=1) -> BN (normalization deferred as well)
    yr, scr, shr = _conv3x3_bn_parts(x, p["wr"], p["gr"], p["br"],
                                     stride=1, cp=cp, eps=eps)

    assert y2.shape == yr.shape, (
        "out += residual requires matching shapes (the original module only "
        "type-checks when the stride-2 branch preserves spatial size, i.e. "
        "H == W == 1).")
    # fused epilogue: BN(main) + BN(residual) + add + ReLU in one pass
    out = _bn_add_relu(y2, sc2, sh2, yr, scr, shr)
    # single NHWC -> NCHW transpose, dropping the lane padding
    return jnp.transpose(out[..., :cout], (0, 3, 1, 2))


def init_params(key, inplanes, outplanes):
    ks = jax.random.split(key, 9)
    conv_w = lambda k, ci, co: 0.1 * jax.random.normal(k, (co, ci, 3, 3), jnp.float32)
    affine_g = lambda k, c: 1.0 + 0.1 * jax.random.normal(k, (c,), jnp.float32)
    affine_b = lambda k, c: 0.1 * jax.random.normal(k, (c,), jnp.float32)
    return {
        "w1": conv_w(ks[0], inplanes, outplanes),
        "g1": affine_g(ks[1], outplanes),
        "b1": affine_b(ks[2], outplanes),
        "w2": conv_w(ks[3], outplanes, outplanes),
        "g2": affine_g(ks[4], outplanes),
        "b2": affine_b(ks[5], outplanes),
        "wr": conv_w(ks[6], inplanes, outplanes),
        "gr": affine_g(ks[7], outplanes),
        "br": affine_b(ks[8], outplanes),
    }


# ---------------------------------------------------------------------------
# Pure-JAX reference (mirrors PyTorch semantics) for correctness checking
# ---------------------------------------------------------------------------
def ref_conv_bn(x, w, gamma, beta, *, stride, relu, eps=1e-5):
    y = lax.conv_general_dilated(
        x, w, (stride, stride), ((1, 1), (1, 1)),
        dimension_numbers=("NCHW", "OIHW", "NCHW"))
    mean = y.mean(axis=(0, 2, 3), keepdims=True)
    var = ((y - mean) ** 2).mean(axis=(0, 2, 3), keepdims=True)
    y = (y - mean) * lax.rsqrt(var + eps)
    y = y * gamma.reshape(1, -1, 1, 1) + beta.reshape(1, -1, 1, 1)
    return jnp.maximum(y, 0.0) if relu else y


def ref_forward(x, p):
    out = ref_conv_bn(x, p["w1"], p["g1"], p["b1"], stride=2, relu=True)
    out = ref_conv_bn(out, p["w2"], p["g2"], p["b2"], stride=1, relu=False)
    res = ref_conv_bn(x, p["wr"], p["gr"], p["br"], stride=1, relu=False)
    return jnp.maximum(out + res, 0.0)


if __name__ == "__main__":
    key = jax.random.PRNGKey(0)
    inplanes, outplanes = 4, 8
    params = init_params(key, inplanes, outplanes)

    # (a) fused conv3x3(stride=2) + BN + ReLU at 16x16
    #     (exercises the parity-split stride-2 path of the main branch).
    xa = jax.random.normal(jax.random.fold_in(key, 1),
                           (2, inplanes, 16, 16), jnp.float32)
    got = jax.block_until_ready(
        pallas_conv3x3_bn(xa, params["w1"], params["g1"], params["b1"],
                          stride=2, relu=True))
    want = ref_conv_bn(xa, params["w1"], params["g1"], params["b1"],
                       stride=2, relu=True)
    err_a = float(jnp.max(jnp.abs(got - want)))
    assert got.shape == want.shape, (got.shape, want.shape)
    assert err_a < 1e-3, f"stride-2 conv+BN+ReLU mismatch: {err_a}"

    # (b) conv3x3(stride=1) + BN at 32x32 (exercises multi-band row tiling and
    #     the cross-tile BN-statistics combine).
    xb = jax.random.normal(jax.random.fold_in(key, 2),
                           (2, inplanes, 32, 32), jnp.float32)
    got = jax.block_until_ready(
        pallas_conv3x3_bn(xb, params["wr"], params["gr"], params["br"],
                          stride=1, relu=False))
    want = ref_conv_bn(xb, params["wr"], params["gr"], params["br"],
                       stride=1, relu=False)
    err_b = float(jnp.max(jnp.abs(got - want)))
    assert err_b < 1e-3, f"stride-1 conv+BN mismatch: {err_b}"

    # (c) full Convolution_block_2 forward.  The PyTorch forward only
    #     type-checks when H == W == 1 (stride-2 main branch vs stride-1
    #     residual branch), so the end-to-end check runs at that shape.
    xc = jax.random.normal(jax.random.fold_in(key, 3),
                           (4, inplanes, 1, 1), jnp.float32)
    fwd = jax.jit(convolution_block_2_forward)
    out = jax.block_until_ready(fwd(xc, params))
    ref = ref_forward(xc, params)
    err_c = float(jnp.max(jnp.abs(out - ref)))
    assert out.shape == (4, outplanes, 1, 1), out.shape
    assert err_c < 1e-3, f"full block mismatch: {err_c}"

    print("KERNEL_OK")
</pallas_src>

<mosaic_0001>
module attributes {stable_mosaic.version = 11 : i64} {
  func.func @_conv_stats_kernel(%arg0: i32, %arg1: i32, %arg2: memref<1x36x9x8xf32, #tpu.memory_space<vmem>>, %arg3: memref<9x8x128xf32, #tpu.memory_space<vmem>>, %arg4: memref<1x8x8x128xf32, #tpu.memory_space<vmem>>, %arg5: memref<1x1x2x128xf32, #tpu.memory_space<vmem>>) attributes {dimension_semantics = [#tpu.dimension_semantics<parallel>, #tpu.dimension_semantics<parallel>], iteration_bounds = array<i64: 2, 1>, scalar_prefetch = 0 : i64, scratch_operands = 0 : i64, tpu.core_type = #tpu.core_type<tc>, window_params = [{transform_indices = @transform_0, window_bounds = array<i64: 1, 36, 9, 8>}, {pipeline_mode = #tpu.pipeline_mode<synchronous>, transform_indices = @transform_1, window_bounds = array<i64: 9, 8, 128>}, {transform_indices = @transform_2, window_bounds = array<i64: 1, 8, 8, 128>}, {transform_indices = @transform_3, window_bounds = array<i64: 1, 1, 2, 128>}]} {
    %cst = arith.constant 0.000000e+00 : f32
    %0 = vector.broadcast %cst : f32 to vector<64x128xf32>
    %c8_i32 = arith.constant 8 : i32
    %1 = arith.muli %arg1, %c8_i32 : i32
    %c0_i32 = arith.constant 0 : i32
    %2 = arith.addi %c0_i32, %1 : i32
    %c0_i32_0 = arith.constant 0 : i32
    %3 = arith.addi %2, %c0_i32_0 : i32
    %c0 = arith.constant 0 : index
    %4 = arith.index_cast %3 : i32 to index
    %c0_1 = arith.constant 0 : index
    %c0_2 = arith.constant 0 : index
    %5 = vector.load %arg2[%c0, %4, %c0_1, %c0_2] : memref<1x36x9x8xf32, #tpu.memory_space<vmem>>, vector<1x8x8x8xf32>
    %6 = vector.shape_cast %5 : vector<1x8x8x8xf32> to vector<8x8x8xf32>
    %7 = vector.shape_cast %6 : vector<8x8x8xf32> to vector<64x8xf32>
    %c0_3 = arith.constant 0 : index
    %c0_4 = arith.constant 0 : index
    %c0_5 = arith.constant 0 : index
    %8 = vector.load %arg3[%c0_3, %c0_4, %c0_5] : memref<9x8x128xf32, #tpu.memory_space<vmem>>, vector<1x8x128xf32>
    %9 = vector.shape_cast %8 : vector<1x8x128xf32> to vector<8x128xf32>
    %cst_6 = arith.constant dense<0.000000e+00> : vector<64x128xf32>
    %10 = tpu.matmul %7, %9, %cst_6 {dimension_numbers = #tpu.dot_dimension_numbers<[1], [0], [0], [1], [0, 0, 1, 1], [], []>} : vector<64x8xf32>, vector<8x128xf32>, vector<64x128xf32> -> vector<64x128xf32>
    %11 = arith.addf %0, %10 : vector<64x128xf32>
    %c8_i32_7 = arith.constant 8 : i32
    %12 = arith.muli %arg1, %c8_i32_7 : i32
    %c9_i32 = arith.constant 9 : i32
    %13 = arith.addi %c9_i32, %12 : i32
    %c0_i32_8 = arith.constant 0 : i32
    %14 = arith.addi %13, %c0_i32_8 : i32
    %c0_9 = arith.constant 0 : index
    %15 = arith.index_cast %14 : i32 to index
    %c0_10 = arith.constant 0 : index
    %c0_11 = arith.constant 0 : index
    %16 = vector.load %arg2[%c0_9, %15, %c0_10, %c0_11] : memref<1x36x9x8xf32, #tpu.memory_space<vmem>>, vector<1x8x8x8xf32>
    %17 = vector.shape_cast %16 : vector<1x8x8x8xf32> to vector<8x8x8xf32>
    %18 = vector.shape_cast %17 : vector<8x8x8xf32> to vector<64x8xf32>
    %c1 = arith.constant 1 : index
    %c0_12 = arith.constant 0 : index
    %c0_13 = arith.constant 0 : index
    %19 = vector.load %arg3[%c1, %c0_12, %c0_13] : memref<9x8x128xf32, #tpu.memory_space<vmem>>, vector<1x8x128xf32>
    %20 = vector.shape_cast %19 : vector<1x8x128xf32> to vector<8x128xf32>
    %cst_14 = arith.constant dense<0.000000e+00> : vector<64x128xf32>
    %21 = tpu.matmul %18, %20, %cst_14 {dimension_numbers = #tpu.dot_dimension_numbers<[1], [0], [0], [1], [0, 0, 1, 1], [], []>} : vector<64x8xf32>, vector<8x128xf32>, vector<64x128xf32> -> vector<64x128xf32>
    %22 = arith.addf %11, %21 : vector<64x128xf32>
    %c8_i32_15 = arith.constant 8 : i32
    %23 = arith.muli %arg1, %c8_i32_15 : i32
    %c0_i32_16 = arith.constant 0 : i32
    %24 = arith.addi %c0_i32_16, %23 : i32
    %c0_i32_17 = arith.constant 0 : i32
    %25 = arith.addi %24, %c0_i32_17 : i32
    %c0_18 = arith.constant 0 : index
    %26 = arith.index_cast %25 : i32 to index
    %c1_19 = arith.constant 1 : index
    %c0_20 = arith.constant 0 : index
    %27 = vector.load %arg2[%c0_18, %26, %c1_19, %c0_20] : memref<1x36x9x8xf32, #tpu.memory_space<vmem>>, vector<1x8x8x8xf32>
    %28 = vector.shape_cast %27 : vector<1x8x8x8xf32> to vector<8x8x8xf32>
    %29 = vector.shape_cast %28 : vector<8x8x8xf32> to vector<64x8xf32>
    %c2 = arith.constant 2 : index
    %c0_21 = arith.constant 0 : index
    %c0_22 = arith.constant 0 : index
    %30 = vector.load %arg3[%c2, %c0_21, %c0_22] : memref<9x8x128xf32, #tpu.memory_space<vmem>>, vector<1x8x128xf32>
    %31 = vector.shape_cast %30 : vector<1x8x128xf32> to vector<8x128xf32>
    %cst_23 = arith.constant dense<0.000000e+00> : vector<64x128xf32>
    %32 = tpu.matmul %29, %31, %cst_23 {dimension_numbers = #tpu.dot_dimension_numbers<[1], [0], [0], [1], [0, 0, 1, 1], [], []>} : vector<64x8xf32>, vector<8x128xf32>, vector<64x128xf32> -> vector<64x128xf32>
    %33 = arith.addf %22, %32 : vector<64x128xf32>
    %c8_i32_24 = arith.constant 8 : i32
    %34 = arith.muli %arg1, %c8_i32_24 : i32
    %c18_i32 = arith.constant 18 : i32
    %35 = arith.addi %c18_i32, %34 : i32
    %c0_i32_25 = arith.constant 0 : i32
    %36 = arith.addi %35, %c0_i32_25 : i32
    %c0_26 = arith.constant 0 : index
    %37 = arith.index_cast %36 : i32 to index
    %c0_27 = arith.constant 0 : index
    %c0_28 = arith.constant 0 : index
    %38 = vector.load %arg2[%c0_26, %37, %c0_27, %c0_28] : memref<1x36x9x8xf32, #tpu.memory_space<vmem>>, vector<1x8x8x8xf32>
    %39 = vector.shape_cast %38 : vector<1x8x8x8xf32> to vector<8x8x8xf32>
    %40 = vector.shape_cast %39 : vector<8x8x8xf32> to vector<64x8xf32>
    %c3 = arith.constant 3 : index
    %c0_29 = arith.constant 0 : index
    %c0_30 = arith.constant 0 : index
    %41 = vector.load %arg3[%c3, %c0_29, %c0_30] : memref<9x8x128xf32, #tpu.memory_space<vmem>>, vector<1x8x128xf32>
    %42 = vector.shape_cast %41 : vector<1x8x128xf32> to vector<8x128xf32>
    %cst_31 = arith.constant dense<0.000000e+00> : vector<64x128xf32>
    %43 = tpu.matmul %40, %42, %cst_31 {dimension_numbers = #tpu.dot_dimension_numbers<[1], [0], [0], [1], [0, 0, 1, 1], [], []>} : vector<64x8xf32>, vector<8x128xf32>, vector<64x128xf32> -> vector<64x128xf32>
    %44 = arith.addf %33, %43 : vector<64x128xf32>
    %c8_i32_32 = arith.constant 8 : i32
    %45 = arith.muli %arg1, %c8_i32_32 : i32
    %c27_i32 = arith.constant 27 : i32
    %46 = arith.addi %c27_i32, %45 : i32
    %c0_i32_33 = arith.constant 0 : i32
    %47 = arith.addi %46, %c0_i32_33 : i32
    %c0_34 = arith.constant 0 : index
    %48 = arith.index_cast %47 : i32 to index
    %c0_35 = arith.constant 0 : index
    %c0_36 = arith.constant 0 : index
    %49 = vector.load %arg2[%c0_34, %48, %c0_35, %c0_36] : memref<1x36x9x8xf32, #tpu.memory_space<vmem>>, vector<1x8x8x8xf32>
    %50 = vector.shape_cast %49 : vector<1x8x8x8xf32> to vector<8x8x8xf32>
    %51 = vector.shape_cast %50 : vector<8x8x8xf32> to vector<64x8xf32>
    %c4 = arith.constant 4 : index
    %c0_37 = arith.constant 0 : index
    %c0_38 = arith.constant 0 : index
    %52 = vector.load %arg3[%c4, %c0_37, %c0_38] : memref<9x8x128xf32, #tpu.memory_space<vmem>>, vector<1x8x128xf32>
    %53 = vector.shape_cast %52 : vector<1x8x128xf32> to vector<8x128xf32>
    %cst_39 = arith.constant dense<0.000000e+00> : vector<64x128xf32>
    %54 = tpu.matmul %51, %53, %cst_39 {dimension_numbers = #tpu.dot_dimension_numbers<[1], [0], [0], [1], [0, 0, 1, 1], [], []>} : vector<64x8xf32>, vector<8x128xf32>, vector<64x128xf32> -> vector<64x128xf32>
    %55 = arith.addf %44, %54 : vector<64x128xf32>
    %c8_i32_40 = arith.constant 8 : i32
    %56 = arith.muli %arg1, %c8_i32_40 : i32
    %c18_i32_41 = arith.constant 18 : i32
    %57 = arith.addi %c18_i32_41, %56 : i32
    %c0_i32_42 = arith.constant 0 : i32
    %58 = arith.addi %57, %c0_i32_42 : i32
    %c0_43 = arith.constant 0 : index
    %59 = arith.index_cast %58 : i32 to index
    %c1_44 = arith.constant 1 : index
    %c0_45 = arith.constant 0 : index
    %60 = vector.load %arg2[%c0_43, %59, %c1_44, %c0_45] : memref<1x36x9x8xf32, #tpu.memory_space<vmem>>, vector<1x8x8x8xf32>
    %61 = vector.shape_cast %60 : vector<1x8x8x8xf32> to vector<8x8x8xf32>
    %62 = vector.shape_cast %61 : vector<8x8x8xf32> to vector<64x8xf32>
    %c5 = arith.constant 5 : index
    %c0_46 = arith.constant 0 : index
    %c0_47 = arith.constant 0 : index
    %63 = vector.load %arg3[%c5, %c0_46, %c0_47] : memref<9x8x128xf32, #tpu.memory_space<vmem>>, vector<1x8x128xf32>
    %64 = vector.shape_cast %63 : vector<1x8x128xf32> to vector<8x128xf32>
    %cst_48 = arith.constant dense<0.000000e+00> : vector<64x128xf32>
    %65 = tpu.matmul %62, %64, %cst_48 {dimension_numbers = #tpu.dot_dimension_numbers<[1], [0], [0], [1], [0, 0, 1, 1], [], []>} : vector<64x8xf32>, vector<8x128xf32>, vector<64x128xf32> -> vector<64x128xf32>
    %66 = arith.addf %55, %65 : vector<64x128xf32>
    %c8_i32_49 = arith.constant 8 : i32
    %67 = arith.muli %arg1, %c8_i32_49 : i32
    %c0_i32_50 = arith.constant 0 : i32
    %68 = arith.addi %c0_i32_50, %67 : i32
    %c1_i32 = arith.constant 1 : i32
    %69 = arith.addi %68, %c1_i32 : i32
    %c0_51 = arith.constant 0 : index
    %70 = arith.index_cast %69 : i32 to index
    %c0_52 = arith.constant 0 : index
    %c0_53 = arith.constant 0 : index
    %71 = vector.load %arg2[%c0_51, %70, %c0_52, %c0_53] : memref<1x36x9x8xf32, #tpu.memory_space<vmem>>, vector<1x8x8x8xf32>
    %72 = vector.shape_cast %71 : vector<1x8x8x8xf32> to vector<8x8x8xf32>
    %73 = vector.shape_cast %72 : vector<8x8x8xf32> to vector<64x8xf32>
    %c6 = arith.constant 6 : index
    %c0_54 = arith.constant 0 : index
    %c0_55 = arith.constant 0 : index
    %74 = vector.load %arg3[%c6, %c0_54, %c0_55] : memref<9x8x128xf32, #tpu.memory_space<vmem>>, vector<1x8x128xf32>
    %75 = vector.shape_cast %74 : vector<1x8x128xf32> to vector<8x128xf32>
    %cst_56 = arith.constant dense<0.000000e+00> : vector<64x128xf32>
    %76 = tpu.matmul %73, %75, %cst_56 {dimension_numbers = #tpu.dot_dimension_numbers<[1], [0], [0], [1], [0, 0, 1, 1], [], []>} : vector<64x8xf32>, vector<8x128xf32>, vector<64x128xf32> -> vector<64x128xf32>
    %77 = arith.addf %66, %76 : vector<64x128xf32>
    %c8_i32_57 = arith.constant 8 : i32
    %78 = arith.muli %arg1, %c8_i32_57 : i32
    %c9_i32_58 = arith.constant 9 : i32
    %79 = arith.addi %c9_i32_58, %78 : i32
    %c1_i32_59 = arith.constant 1 : i32
    %80 = arith.addi %79, %c1_i32_59 : i32
    %c0_60 = arith.constant 0 : index
    %81 = arith.index_cast %80 : i32 to index
    %c0_61 = arith.constant 0 : index
    %c0_62 = arith.constant 0 : index
    %82 = vector.load %arg2[%c0_60, %81, %c0_61, %c0_62] : memref<1x36x9x8xf32, #tpu.memory_space<vmem>>, vector<1x8x8x8xf32>
    %83 = vector.shape_cast %82 : vector<1x8x8x8xf32> to vector<8x8x8xf32>
    %84 = vector.shape_cast %83 : vector<8x8x8xf32> to vector<64x8xf32>
    %c7 = arith.constant 7 : index
    %c0_63 = arith.constant 0 : index
    %c0_64 = arith.constant 0 : index
    %85 = vector.load %arg3[%c7, %c0_63, %c0_64] : memref<9x8x128xf32, #tpu.memory_space<vmem>>, vector<1x8x128xf32>
    %86 = vector.shape_cast %85 : vector<1x8x128xf32> to vector<8x128xf32>
    %cst_65 = arith.constant dense<0.000000e+00> : vector<64x128xf32>
    %87 = tpu.matmul %84, %86, %cst_65 {dimension_numbers = #tpu.dot_dimension_numbers<[1], [0], [0], [1], [0, 0, 1, 1], [], []>} : vector<64x8xf32>, vector<8x128xf32>, vector<64x128xf32> -> vector<64x128xf32>
    %88 = arith.addf %77, %87 : vector<64x128xf32>
    %c8_i32_66 = arith.constant 8 : i32
    %89 = arith.muli %arg1, %c8_i32_66 : i32
    %c0_i32_67 = arith.constant 0 : i32
    %90 = arith.addi %c0_i32_67, %89 : i32
    %c1_i32_68 = arith.constant 1 : i32
    %91 = arith.addi %90, %c1_i32_68 : i32
    %c0_69 = arith.constant 0 : index
    %92 = arith.index_cast %91 : i32 to index
    %c1_70 = arith.constant 1 : index
    %c0_71 = arith.constant 0 : index
    %93 = vector.load %arg2[%c0_69, %92, %c1_70, %c0_71] : memref<1x36x9x8xf32, #tpu.memory_space<vmem>>, vector<1x8x8x8xf32>
    %94 = vector.shape_cast %93 : vector<1x8x8x8xf32> to vector<8x8x8xf32>
    %95 = vector.shape_cast %94 : vector<8x8x8xf32> to vector<64x8xf32>
    %c8 = arith.constant 8 : index
    %c0_72 = arith.constant 0 : index
    %c0_73 = arith.constant 0 : index
    %96 = vector.load %arg3[%c8, %c0_72, %c0_73] : memref<9x8x128xf32, #tpu.memory_space<vmem>>, vector<1x8x128xf32>
    %97 = vector.shape_cast %96 : vector<1x8x128xf32> to vector<8x128xf32>
    %cst_74 = arith.constant dense<0.000000e+00> : vector<64x128xf32>
    %98 = tpu.matmul %95, %97, %cst_74 {dimension_numbers = #tpu.dot_dimension_numbers<[1], [0], [0], [1], [0, 0, 1, 1], [], []>} : vector<64x8xf32>, vector<8x128xf32>, vector<64x128xf32> -> vector<64x128xf32>
    %99 = arith.addf %88, %98 : vector<64x128xf32>
    %100 = vector.shape_cast %99 : vector<64x128xf32> to vector<1x8x8x128xf32>
    %c0_75 = arith.constant 0 : index
    %c0_76 = arith.constant 0 : index
    %c0_77 = arith.constant 0 : index
    %c0_78 = arith.constant 0 : index
    %101 = vector.load %arg4[%c0_75, %c0_76, %c0_77, %c0_78] : memref<1x8x8x128xf32, #tpu.memory_space<vmem>>, vector<1x8x8x128xf32>
    tpu.vector_store %arg4[%c0_75, %c0_76, %c0_77, %c0_78], %100 {strides = array<i32>} : memref<1x8x8x128xf32, #tpu.memory_space<vmem>>, vector<1x8x8x128xf32>,
    %cst_79 = arith.constant dense<0.000000e+00> : vector<128xf32>
    %102 = vector.multi_reduction <add>, %99, %cst_79 [0] : vector<64x128xf32> to vector<128xf32>
    %103 = vector.shape_cast %102 : vector<128xf32> to vector<1x128xf32>
    %104 = arith.mulf %99, %99 : vector<64x128xf32>
    %cst_80 = arith.constant dense<0.000000e+00> : vector<128xf32>
    %105 = vector.multi_reduction <add>, %104, %cst_80 [0] : vector<64x128xf32> to vector<128xf32>
    %106 = vector.shape_cast %105 : vector<128xf32> to vector<1x128xf32>
    %107 = tpu.concatenate %103, %106 in 0 : vector<1x128xf32>, vector<1x128xf32> -> vector<2x128xf32>
    %108 = vector.shape_cast %107 : vector<2x128xf32> to vector<1x1x2x128xf32>
    %c0_81 = arith.constant 0 : index
    %c0_82 = arith.constant 0 : index
    %c0_83 = arith.constant 0 : index
    %c0_84 = arith.constant 0 : index
    %109 = vector.load %arg5[%c0_81, %c0_82, %c0_83, %c0_84] : memref<1x1x2x128xf32, #tpu.memory_space<vmem>>, vector<1x1x2x128xf32>
    tpu.vector_store %arg5[%c0_81, %c0_82, %c0_83, %c0_84], %108 {strides = array<i32>} : memref<1x1x2x128xf32, #tpu.memory_space<vmem>>, vector<1x1x2x128xf32>,
    return
  }
  func.func @transform_0(%arg0: i32, %arg1: i32) -> (i32, i32, i32, i32) {
    %c0_i32 = arith.constant 0 : i32
    %c0_i32_0 = arith.constant 0 : i32
    %c0_i32_1 = arith.constant 0 : i32
    %c0_i32_2 = arith.constant 0 : i32
    return %arg0, %c0_i32, %c0_i32_0, %c0_i32_1 : i32, i32, i32, i32
  }
  func.func @transform_1(%arg0: i32, %arg1: i32) -> (i32, i32, i32) {
    %c0_i32 = arith.constant 0 : i32
    %c0_i32_0 = arith.constant 0 : i32
    %c0_i32_1 = arith.constant 0 : i32
    %c0_i32_2 = arith.constant 0 : i32
    return %c0_i32, %c0_i32_0, %c0_i32_1 : i32, i32, i32
  }
  func.func @transform_2(%arg0: i32, %arg1: i32) -> (i32, i32, i32, i32) {
    %c0_i32 = arith.constant 0 : i32
    %c0_i32_0 = arith.constant 0 : i32
    %c0_i32_1 = arith.constant 0 : i32
    return %arg0, %arg1, %c0_i32, %c0_i32_0 : i32, i32, i32, i32
  }
  func.func @transform_3(%arg0: i32, %arg1: i32) -> (i32, i32, i32, i32) {
    %c0_i32 = arith.constant 0 : i32
    %c0_i32_0 = arith.constant 0 : i32
    %c0_i32_1 = arith.constant 0 : i32
    return %arg0, %arg1, %c0_i32, %c0_i32_0 : i32, i32, i32, i32
  }
}

</mosaic_0001>

<llo_original>
// kernel: tpu_custom_call.1
$region0: #{tpu_custom_call.1}
  #allocation0 [shape = 'u32[]', space=smem, size = 0x4, offset = 0x4, fixed_abs, tag = 'smem constant byte address 0x4 - core index']
  #allocation1 [shape = 'u32[72,128]{1,0:T(1,128)}', space=vmem, size = 0x9000, scoped, tag = 'internal scratch']
  %s0 = inlined_call_operand.vmem [shape: f32[2,36,9,8], index: 0, kind: input, shape index: {}]
  %s1 = inlined_call_operand.vmem [shape: f32[9,8,128], index: 1, kind: input, shape index: {}]
  %s2 = inlined_call_operand.hbm [shape: f32[2,8,8,128], index: 2, kind: output, shape index: {0}]
  %s3 = inlined_call_operand.hbm [shape: f32[2,1,2,128], index: 3, kind: output, shape index: {1}]
  %4 = xla_tuple %s2, %s3
  %s5 = sld [smem:[#allocation0]]
  $region49: #{tpu_custom_call.1} parent=0
    _
  %s7 = ssub.s32 1, %s5
  %s8 = scalar_select 0, %s7, %s5
  $region1: #{tpu_custom_call.1} parent=0
    #allocation2 [shape = 'u8[65536]{0}', space=vmem, size = 0x10000, scoped, tag = 'output window, operand 0']
    #allocation3 [shape = 's32[2]{0}', space=sflag, size = 0x8, scoped, tag = 'scoped memory for tpu_custom_call.1']
    #allocation4 [shape = 'u8[2048]{0}', space=vmem, size = 0x800, scoped, tag = 'output window, operand 1']
    #allocation5 [shape = 's32[2]{0}', space=sflag, size = 0x8, scoped, tag = 'scoped memory for tpu_custom_call.1']
    %9 = vsyncpa [#allocation3], 0
    %s10 = scalar_lea.sflag [#allocation3], 1
    %11 = vsyncpa %s10, 0
    %12 = vsyncpa [#allocation5], 0
    %s13 = scalar_lea.sflag [#allocation5], 1
    %14 = vsyncpa %s13, 0
    loop: start=0, step=1, limit=4
    $region2: #{tpu_custom_call.1} parent=1 // loop_pre_header
      _
    $region3: #{tpu_custom_call.1} parent=1 // loop_header
      %s16 = sphi 0, %s20
      %p17 = scmp.ge.s32.totalorder %s16, 4
      %s23 = sphi 0, %s35
      %s24 = sphi 0, %s31
      %s25 = sphi 0, %s23
      %s26 = sphi 0, %s24
      %s27 = sphi 0, %s25
      %s28 = sphi 0, %s26
      %s38 = sphi 0, %s40
      %s41 = sphi 0, %s38
      %s42 = sphi 0, %s41
      %s58 = sphi 0, %s42
      %s62 = sphi 0, %s62
      %s64 = sphi 0, %s62
      %s65 = sphi 0, %s64
      %s79 = sphi 0, %s65
      %s87 = sphi 0, %s89
      %s90 = sphi 0, %s87
      %s91 = sphi 0, %s90
      %s107 = sphi 0, %s91
      %s115 = sphi 0, %s117
      %s118 = sphi 0, %s115
      %s119 = sphi 0, %s118
      %s135 = sphi 0, %s119
    $region4: #{tpu_custom_call.1} parent=1 // loop_header_branch
      %19 = sbr.rel (%p17) target = $region8
    $region5: #{tpu_custom_call.1} parent=1 // loop_body
      %s21 = ssub.s32 %s16, 1
      %s22 = ssub.s32 %s16, 2
      %s29 = sadd.s32 1, %s24
      %p30 = scmp.ge.s32.totalorder %s29, 1
      %s31 = scalar_select %p30, 0, %s29
      %s32 = sadd.s32 1, %s23
      %s33 = scalar_select %p30, %s32, %s23
      %p34 = scmp.ge.s32.totalorder %s33, 2
      %s35 = scalar_select %p34, 0, %s33
      %s36 = ssub.s32 %s23, %s35
      %p37 = scmp.eq.s32.totalorder %s36, 0
      %s39 = sadd.s32 %s38, 1
      %s40 = scalar_select %p37, %s38, %s39
      %p43 = pneg %p37
      %p44 = scmp.eq.s32.totalorder %s16, 1
      %p45 = por %p43, %p44
      %p46 = scmp.ne.s32.totalorder %s38, %s41
      %p47 = scmp.eq.s32.totalorder %s16, 0
      %p48 = por %p46, %p47
      %p49 = scmp.ne.s32.totalorder %s38, %s41
      %p50 = scmp.eq.s32.totalorder %s21, 1
      %p51 = por %p49, %p50
      %p52 = scmp.ne.s32.totalorder %s41, %s42
      %p53 = scmp.eq.s32.totalorder %s21, 0
      %p54 = por %p52, %p53
      %p55 = scmp.ne.s32.totalorder %s41, %s42
      %p56 = scmp.eq.s32.totalorder %s22, 1
      %p57 = por %p55, %p56
      %p59 = scmp.ne.s32.totalorder %s42, %s58
      %p60 = scmp.eq.s32.totalorder %s22, 0
      %p61 = por %p59, %p60
      %s63 = sadd.s32 %s62, 1
      %p66 = scmp.eq.s32.totalorder %s16, 1
      %p67 = scmp.ne.s32.totalorder %s62, %s64
      %p68 = scmp.eq.s32.totalorder %s16, 0
      %p69 = por %p67, %p68
      %p70 = scmp.ne.s32.totalorder %s62, %s64
      %p71 = scmp.eq.s32.totalorder %s21, 1
      %p72 = por %p70, %p71
      %p73 = scmp.ne.s32.totalorder %s64, %s65
      %p74 = scmp.eq.s32.totalorder %s21, 0
      %p75 = por %p73, %p74
      %p76 = scmp.ne.s32.totalorder %s64, %s65
      %p77 = scmp.eq.s32.totalorder %s22, 1
      %p78 = por %p76, %p77
      %p80 = scmp.ne.s32.totalorder %s65, %s79
      %p81 = scmp.eq.s32.totalorder %s22, 0
      %p82 = por %p80, %p81
      %s83 = ssub.s32 %s23, %s35
      %s84 = ssub.s32 %s24, %s31
      %s85 = sor.u32 %s83, %s84
      %p86 = scmp.eq.s32.totalorder %s85, 0
      %s88 = sadd.s32 %s87, 1
      %s89 = scalar_select %p86, %s87, %s88
      %p92 = pneg %p86
      %p93 = scmp.eq.s32.totalorder %s16, 1
      %p94 = por %p92, %p93
      %p95 = scmp.ne.s32.totalorder %s87, %s90
      %p96 = scmp.eq.s32.totalorder %s16, 0
      %p97 = por %p95, %p96
      %p98 = scmp.ne.s32.totalorder %s87, %s90
      %p99 = scmp.eq.s32.totalorder %s21, 1
      %p100 = por %p98, %p99
      %p101 = scmp.ne.s32.totalorder %s90, %s91
      %p102 = scmp.eq.s32.totalorder %s21, 0
      %p103 = por %p101, %p102
      %p104 = scmp.ne.s32.totalorder %s90, %s91
      %p105 = scmp.eq.s32.totalorder %s22, 1
      %p106 = por %p104, %p105
      %p108 = scmp.ne.s32.totalorder %s91, %s107
      %p109 = scmp.eq.s32.totalorder %s22, 0
      %p110 = por %p108, %p109
      %s111 = ssub.s32 %s23, %s35
      %s112 = ssub.s32 %s24, %s31
      %s113 = sor.u32 %s111, %s112
      %p114 = scmp.eq.s32.totalorder %s113, 0
      %s116 = sadd.s32 %s115, 1
      %s117 = scalar_select %p114, %s115, %s116
      %p120 = pneg %p114
      %p121 = scmp.eq.s32.totalorder %s16, 1
      %p122 = por %p120, %p121
      %p123 = scmp.ne.s32.totalorder %s115, %s118
      %p124 = scmp.eq.s32.totalorder %s16, 0
      %p125 = por %p123, %p124
      %p126 = scmp.ne.s32.totalorder %s115, %s118
      %p127 = scmp.eq.s32.totalorder %s21, 1
      %p128 = por %p126, %p127
      %p129 = scmp.ne.s32.totalorder %s118, %s119
      %p130 = scmp.eq.s32.totalorder %s21, 0
      %p131 = por %p129, %p130
      %p132 = scmp.ne.s32.totalorder %s118, %s119
      %p133 = scmp.eq.s32.totalorder %s22, 1
      %p134 = por %p132, %p133
      %p136 = scmp.ne.s32.totalorder %s119, %s135
      %p137 = scmp.eq.s32.totalorder %s22, 0
      %p138 = por %p136, %p137
      %p139 = scmp.le.s32.totalorder 1, %s16
      %p140 = scmp.lt.s32.totalorder %s16, 3
      %p141 = pnand %p139, %p140
      %p142 = pneg %p141
      // Predicated region
      $region9: #{tpu_custom_call.1} parent=5 // pred_check
        _
      $region10: #{tpu_custom_call.1} parent=5 // pred_check_branch
        %144 = sbr.rel (%p141) target = $region12
      $region11: #{tpu_custom_call.1} parent=5 // pred_region
        %s145 = ssub.s32 %s16, 1
        // Predicated region
        $region13: #{tpu_custom_call.1} parent=11 // pred_check
          %p146 = pneg %p75
        $region14: #{tpu_custom_call.1} parent=11 // pred_check_branch
          %148 = sbr.rel (%p146) target = $region16
        $region15: #{tpu_custom_call.1} parent=11 // pred_region
          _
        $region16: #{tpu_custom_call.1} parent=11 // pred_fallthru
          _
      $region12: #{tpu_custom_call.1} parent=5 // pred_fallthru
        _
      %p149 = scmp.lt.s32.totalorder %s16, 2
      // Predicated region
      $region17: #{tpu_custom_call.1} parent=5 // pred_check
        %p150 = pneg %p149
      $region18: #{tpu_custom_call.1} parent=5 // pred_check_branch
        %152 = sbr.rel (%p150) target = $region20
      $region19: #{tpu_custom_call.1} parent=5 // pred_region
        // Predicated region
        $region21: #{tpu_custom_call.1} parent=19 // pred_check
          %p153 = pneg %p48
        $region22: #{tpu_custom_call.1} parent=19 // pred_check_branch
          %155 = sbr.rel (%p153) target = $region24
        $region23: #{tpu_custom_call.1} parent=19 // pred_region
          %p156 = scmp.lt.s32.totalorder %s23, 1
          %s157 = scalar_select %p156, %s23, 1
          %s158 = smul.addr %s157, 72
          %s159 = smul.addr %s158, 8
          %s160 = scalar_lea.vmem %s0, %s159
        $region24: #{tpu_custom_call.1} parent=19 // pred_fallthru
          _
      $region20: #{tpu_custom_call.1} parent=5 // pred_fallthru
        _
      %p161 = scmp.le.s32.totalorder 1, %s16
      %p162 = scmp.lt.s32.totalorder %s16, 3
      %p163 = pnand %p161, %p162
      %p164 = pneg %p163
      // Predicated region
      $region25: #{tpu_custom_call.1} parent=5 // pred_check
        _
      $region26: #{tpu_custom_call.1} parent=5 // pred_check_branch
        %166 = sbr.rel (%p163) target = $region28
      $region27: #{tpu_custom_call.1} parent=5 // pred_region
        %s167 = ssub.s32 %s16, 1
        %p168 = scmp.lt.s32.totalorder %s25, 1
        %s169 = scalar_select %p168, %s25, 1
        %s170 = smul.addr %s169, 72
        %s171 = smul.addr %s170, 8
        %s172 = scalar_lea.vmem %s0, %s171
        %p173 = pneg %p54
        %p174 = pneg %p51
        %p175 = pneg %p75
        %p176 = pneg %p72
        %p177 = pneg %p103
        %p178 = pneg %p100
        %s179 = sand.u32 %s90, 1
        %s180 = scalar_lea.sflag [#allocation3], %s179
        %s181 = sand.u32 %s90, 1
        %s182 = smul.addr %s181, 64
        %s183 = scalar_lea.vmem [#allocation2], %s182
        %p184 = pneg %p131
        %p185 = pneg %p128
        %s186 = sand.u32 %s118, 1
        %s187 = scalar_lea.sflag [#allocation5], %s186
        %s188 = sand.u32 %s118, 1
        %s189 = smul.addr %s188, 2
        %s190 = scalar_lea.vmem [#allocation4], %s189
        %p191 = scmp.lt.s32.totalorder %s25, 1
        %s192 = scalar_select %p191, %s25, 1
        %s193 = smul.addr %s192, 72
        %s194 = smul.addr %s193, 8
        %s195 = scalar_lea.vmem %s0, %s194
        %s196 = smul.u32 8, %s26
        %s197 = smul.u32 %s26, 8
        %s198 = smul.u32 %s197, 16
        %s199 = scalar_lea.vmem %s195, %s198
        %v200 = vld [vmem:[%s199] sm:$0xff]
        %v201 = vld [vmem:[%s199 + $0x10] sm:$0xff]
        %v202 = vld [vmem:[%s199 + $0x20] sm:$0xff]
        %v203 = vld [vmem:[%s199 + $0x30] sm:$0xff]
        %v204 = vld [vmem:[%s199 + $0x40] sm:$0xff]
        %v205 = vld [vmem:[%s199 + $0x50] sm:$0xff]
        %v206 = vld [vmem:[%s199 + $0x60] sm:$0xff]
        %v207 = vld [vmem:[%s199 + $0x70] sm:$0xff]
        %v208 = vld [vmem:[%s1] sm:$0xff]
        %s209 = sadd.s32 %s197, 9
        %s210 = smul.u32 %s209, 16
        %s211 = scalar_lea.vmem %s195, %s210
        %v212 = vld [vmem:[%s211] sm:$0xff]
        %v213 = vld [vmem:[%s211 + $0x10] sm:$0xff]
        %v214 = vld [vmem:[%s211 + $0x20] sm:$0xff]
        %v215 = vld [vmem:[%s211 + $0x30] sm:$0xff]
        %v216 = vld [vmem:[%s211 + $0x40] sm:$0xff]
        %v217 = vld [vmem:[%s211 + $0x50] sm:$0xff]
        %v218 = vld [vmem:[%s211 + $0x60] sm:$0xff]
        %v219 = vld [vmem:[%s211 + $0x70] sm:$0xff]
        %s220 = scalar_lea.vmem %s1, 8
        %v221 = vld [vmem:[%s220] sm:$0xff]
        %vm222 = vcmask 64512
        %v224 = vsel %vm222, %v212, 0
        %v227 = vsel %vm222, %v213, 0
        %v230 = vsel %vm222, %v214, 0
        %v233 = vsel %vm222, %v215, 0
        %v236 = vsel %vm222, %v216, 0
        %v239 = vsel %vm222, %v217, 0
        %v242 = vsel %vm222, %v218, 0
        %v245 = vsel %vm222, %v219, 0
        %247 = vmatpush.msra.mxu0 0.0
        %248 = vmatpush.msra.mxu0 0.0
        %249 = vmatpush.msra.mxu0 0.0
        %250 = vmatpush.msra.mxu0 0.0
        %251 = vmatpush.msra.mxu0 0.0
        %252 = vmatpush.msra.mxu0 0.0
        %253 = vmatpush.msra.mxu0 0.0
        %254 = vmatpush.msra.mxu0 0.0
        %255 = vmatpush.msra.mxu0 0.0
        %256 = vmatpush.msra.mxu0 0.0
        %257 = vmatpush.msra.mxu0 0.0
        %258 = vmatpush.msra.mxu0 0.0
        %259 = vmatpush.msra.mxu0 0.0
        %260 = vmatpush.msra.mxu0 0.0
        %261 = vmatpush.msra.mxu0 0.0
        %262 = vmatpush.msra.mxu0 %v221
        %263 = vmatmul.f32.gmra.mxu0 %v224
        %v264 = vpop.f32.mrf.mxu0
        %v265 = vadd.f32 0.0, %v264
        %266 = vmatmul.f32.gmra.mxu0 %v227
        %v267 = vpop.f32.mrf.mxu0
        %v268 = vadd.f32 0.0, %v267
        %269 = vmatmul.f32.gmra.mxu0 %v230
        %v270 = vpop.f32.mrf.mxu0
        %v271 = vadd.f32 0.0, %v270
        %272 = vmatmul.f32.gmra.mxu0 %v233
        %v273 = vpop.f32.mrf.mxu0
        %v274 = vadd.f32 0.0, %v273
        %275 = vmatmul.f32.gmra.mxu0 %v236
        %v276 = vpop.f32.mrf.mxu0
        %v277 = vadd.f32 0.0, %v276
        %278 = vmatmul.f32.gmra.mxu0 %v239
        %v279 = vpop.f32.mrf.mxu0
        %v280 = vadd.f32 0.0, %v279
        %281 = vmatmul.f32.gmra.mxu0 %v242
        %v282 = vpop.f32.mrf.mxu0
        %v283 = vadd.f32 0.0, %v282
        %284 = vmatmul.f32.gmra.mxu0 %v245
        %v285 = vpop.f32.mrf.mxu0
        %v286 = vadd.f32 0.0, %v285
        %287 = vdwg.mxu0
        %v289 = vsel %vm222, %v200, 0
        %v292 = vsel %vm222, %v201, 0
        %v295 = vsel %vm222, %v202, 0
        %v298 = vsel %vm222, %v203, 0
        %v301 = vsel %vm222, %v204, 0
        %v304 = vsel %vm222, %v205, 0
        %v307 = vsel %vm222, %v206, 0
        %v310 = vsel %vm222, %v207, 0
        %312 = vmatpush.msra.mxu0 0.0
        %313 = vmatpush.msra.mxu0 0.0
        %314 = vmatpush.msra.mxu0 0.0
        %315 = vmatpush.msra.mxu0 0.0
        %316 = vmatpush.msra.mxu0 0.0
        %317 = vmatpush.msra.mxu0 0.0
        %318 = vmatpush.msra.mxu0 0.0
        %319 = vmatpush.msra.mxu0 0.0
        %320 = vmatpush.msra.mxu0 0.0
        %321 = vmatpush.msra.mxu0 0.0
        %322 = vmatpush.msra.mxu0 0.0
        %323 = vmatpush.msra.mxu0 0.0
        %324 = vmatpush.msra.mxu0 0.0
        %325 = vmatpush.msra.mxu0 0.0
        %326 = vmatpush.msra.mxu0 0.0
        %327 = vmatpush.msra.mxu0 %v208
        %328 = vmatmul.f32.gmra.mxu0 %v289
        %v329 = vpop.f32.mrf.mxu0
        %v330 = vadd.f32 %v265, %v329
        %331 = vmatmul.f32.gmra.mxu0 %v292
        %v332 = vpop.f32.mrf.mxu0
        %v333 = vadd.f32 %v268, %v332
        %334 = vmatmul.f32.gmra.mxu0 %v295
        %v335 = vpop.f32.mrf.mxu0
        %v336 = vadd.f32 %v271, %v335
        %337 = vmatmul.f32.gmra.mxu0 %v298
        %v338 = vpop.f32.mrf.mxu0
        %v339 = vadd.f32 %v274, %v338
        %340 = vmatmul.f32.gmra.mxu0 %v301
        %v341 = vpop.f32.mrf.mxu0
        %v342 = vadd.f32 %v277, %v341
        %343 = vmatmul.f32.gmra.mxu0 %v304
        %v344 = vpop.f32.mrf.mxu0
        %v345 = vadd.f32 %v280, %v344
        %346 = vmatmul.f32.gmra.mxu0 %v307
        %v347 = vpop.f32.mrf.mxu0
        %v348 = vadd.f32 %v283, %v347
        %349 = vmatmul.f32.gmra.mxu0 %v310
        %v350 = vpop.f32.mrf.mxu0
        %v351 = vadd.f32 %v286, %v350
        %352 = vdwg.mxu0
        %v353 = vld [vmem:[%s199 + $0x1] sm:$0xff]
        %v354 = vld [vmem:[%s199 + $0x11] sm:$0xff]
        %v355 = vld [vmem:[%s199 + $0x21] sm:$0xff]
        %v356 = vld [vmem:[%s199 + $0x31] sm:$0xff]
        %v357 = vld [vmem:[%s199 + $0x41] sm:$0xff]
        %v358 = vld [vmem:[%s199 + $0x51] sm:$0xff]
        %v359 = vld [vmem:[%s199 + $0x61] sm:$0xff]
        %v360 = vld [vmem:[%s199 + $0x71] sm:$0xff]
        %s361 = scalar_lea.vmem %s1, 16
        %v362 = vld [vmem:[%s361] sm:$0xff]
        %v364 = vsel %vm222, %v353, 0
        %v367 = vsel %vm222, %v354, 0
        %v370 = vsel %vm222, %v355, 0
        %v373 = vsel %vm222, %v356, 0
        %v376 = vsel %vm222, %v357, 0
        %v379 = vsel %vm222, %v358, 0
        %v382 = vsel %vm222, %v359, 0
        %v385 = vsel %vm222, %v360, 0
        %387 = vmatpush.msra.mxu0 0.0
        %388 = vmatpush.msra.mxu0 0.0
        %389 = vmatpush.msra.mxu0 0.0
        %390 = vmatpush.msra.mxu0 0.0
        %391 = vmatpush.msra.mxu0 0.0
        %392 = vmatpush.msra.mxu0 0.0
        %393 = vmatpush.msra.mxu0 0.0
        %394 = vmatpush.msra.mxu0 0.0
        %395 = vmatpush.msra.mxu0 0.0
        %396 = vmatpush.msra.mxu0 0.0
        %397 = vmatpush.msra.mxu0 0.0
        %398 = vmatpush.msra.mxu0 0.0
        %399 = vmatpush.msra.mxu0 0.0
        %400 = vmatpush.msra.mxu0 0.0
        %401 = vmatpush.msra.mxu0 0.0
        %402 = vmatpush.msra.mxu0 %v362
        %403 = vmatmul.f32.gmra.mxu0 %v364
        %v404 = vpop.f32.mrf.mxu0
        %v405 = vadd.f32 0.0, %v404
        %406 = vmatmul.f32.gmra.mxu0 %v367
        %v407 = vpop.f32.mrf.mxu0
        %v408 = vadd.f32 0.0, %v407
        %409 = vmatmul.f32.gmra.mxu0 %v370
        %v410 = vpop.f32.mrf.mxu0
        %v411 = vadd.f32 0.0, %v410
        %412 = vmatmul.f32.gmra.mxu0 %v373
        %v413 = vpop.f32.mrf.mxu0
        %v414 = vadd.f32 0.0, %v413
        %415 = vmatmul.f32.gmra.mxu0 %v376
        %v416 = vpop.f32.mrf.mxu0
        %v417 = vadd.f32 0.0, %v416
        %418 = vmatmul.f32.gmra.mxu0 %v379
        %v419 = vpop.f32.mrf.mxu0
        %v420 = vadd.f32 0.0, %v419
        %421 = vmatmul.f32.gmra.mxu0 %v382
        %v422 = vpop.f32.mrf.mxu0
        %v423 = vadd.f32 0.0, %v422
        %424 = vmatmul.f32.gmra.mxu0 %v385
        %v425 = vpop.f32.mrf.mxu0
        %v426 = vadd.f32 0.0, %v425
        %427 = vdwg.mxu0
        %v428 = vadd.f32 %v330, %v405
        %v429 = vadd.f32 %v333, %v408
        %v430 = vadd.f32 %v336, %v411
        %v431 = vadd.f32 %v339, %v414
        %v432 = vadd.f32 %v342, %v417
        %v433 = vadd.f32 %v345, %v420
        %v434 = vadd.f32 %v348, %v423
        %v435 = vadd.f32 %v351, %v426
        %s436 = sadd.s32 %s197, 18
        %s437 = smul.u32 %s436, 16
        %s438 = scalar_lea.vmem %s195, %s437
        %v439 = vld [vmem:[%s438] sm:$0xff]
        %v440 = vld [vmem:[%s438 + $0x10] sm:$0xff]
        %v441 = vld [vmem:[%s438 + $0x20] sm:$0xff]
        %v442 = vld [vmem:[%s438 + $0x30] sm:$0xff]
        %v443 = vld [vmem:[%s438 + $0x40] sm:$0xff]
        %v444 = vld [vmem:[%s438 + $0x50] sm:$0xff]
        %v445 = vld [vmem:[%s438 + $0x60] sm:$0xff]
        %v446 = vld [vmem:[%s438 + $0x70] sm:$0xff]
        %s447 = scalar_lea.vmem %s1, 24
        %v448 = vld [vmem:[%s447] sm:$0xff]
        %v450 = vsel %vm222, %v439, 0
        %v453 = vsel %vm222, %v440, 0
        %v456 = vsel %vm222, %v441, 0
        %v459 = vsel %vm222, %v442, 0
        %v462 = vsel %vm222, %v443, 0
        %v465 = vsel %vm222, %v444, 0
        %v468 = vsel %vm222, %v445, 0
        %v471 = vsel %vm222, %v446, 0
        %473 = vmatpush.msra.mxu0 0.0
        %474 = vmatpush.msra.mxu0 0.0
        %475 = vmatpush.msra.mxu0 0.0
        %476 = vmatpush.msra.mxu0 0.0
        %477 = vmatpush.msra.mxu0 0.0
        %478 = vmatpush.msra.mxu0 0.0
        %479 = vmatpush.msra.mxu0 0.0
        %480 = vmatpush.msra.mxu0 0.0
        %481 = vmatpush.msra.mxu0 0.0
        %482 = vmatpush.msra.mxu0 0.0
        %483 = vmatpush.msra.mxu0 0.0
        %484 = vmatpush.msra.mxu0 0.0
        %485 = vmatpush.msra.mxu0 0.0
        %486 = vmatpush.msra.mxu0 0.0
        %487 = vmatpush.msra.mxu0 0.0
        %488 = vmatpush.msra.mxu0 %v448
        %489 = vmatmul.f32.gmra.mxu0 %v450
        %v490 = vpop.f32.mrf.mxu0
        %v491 = vadd.f32 0.0, %v490
        %492 = vmatmul.f32.gmra.mxu0 %v453
        %v493 = vpop.f32.mrf.mxu0
        %v494 = vadd.f32 0.0, %v493
        %495 = vmatmul.f32.gmra.mxu0 %v456
        %v496 = vpop.f32.mrf.mxu0
        %v497 = vadd.f32 0.0, %v496
        %498 = vmatmul.f32.gmra.mxu0 %v459
        %v499 = vpop.f32.mrf.mxu0
        %v500 = vadd.f32 0.0, %v499
        %501 = vmatmul.f32.gmra.mxu0 %v462
        %v502 = vpop.f32.mrf.mxu0
        %v503 = vadd.f32 0.0, %v502
        %504 = vmatmul.f32.gmra.mxu0 %v465
        %v505 = vpop.f32.mrf.mxu0
        %v506 = vadd.f32 0.0, %v505
        %507 = vmatmul.f32.gmra.mxu0 %v468
        %v508 = vpop.f32.mrf.mxu0
        %v509 = vadd.f32 0.0, %v508
        %510 = vmatmul.f32.gmra.mxu0 %v471
        %v511 = vpop.f32.mrf.mxu0
        %v512 = vadd.f32 0.0, %v511
        %513 = vdwg.mxu0
        %v514 = vadd.f32 %v428, %v491
        %v515 = vadd.f32 %v429, %v494
        %v516 = vadd.f32 %v430, %v497
        %v517 = vadd.f32 %v431, %v500
        %v518 = vadd.f32 %v432, %v503
        %v519 = vadd.f32 %v433, %v506
        %v520 = vadd.f32 %v434, %v509
        %v521 = vadd.f32 %v435, %v512
        %s522 = sadd.s32 %s197, 27
        %s523 = smul.u32 %s522, 16
        %s524 = scalar_lea.vmem %s195, %s523
        %v525 = vld [vmem:[%s524] sm:$0xff]
        %v526 = vld [vmem:[%s524 + $0x10] sm:$0xff]
        %v527 = vld [vmem:[%s524 + $0x20] sm:$0xff]
        %v528 = vld [vmem:[%s524 + $0x30] sm:$0xff]
        %v529 = vld [vmem:[%s524 + $0x40] sm:$0xff]
        %v530 = vld [vmem:[%s524 + $0x50] sm:$0xff]
        %v531 = vld [vmem:[%s524 + $0x60] sm:$0xff]
        %v532 = vld [vmem:[%s524 + $0x70] sm:$0xff]
        %s533 = scalar_lea.vmem %s1, 32
        %v534 = vld [vmem:[%s533] sm:$0xff]
        %v536 = vsel %vm222, %v525, 0
        %v539 = vsel %vm222, %v526, 0
        %v542 = vsel %vm222, %v527, 0
        %v545 = vsel %vm222, %v528, 0
        %v548 = vsel %vm222, %v529, 0
        %v551 = vsel %vm222, %v530, 0
        %v554 = vsel %vm222, %v531, 0
        %v557 = vsel %vm222, %v532, 0
        %559 = vmatpush.msra.mxu0 0.0
        %560 = vmatpush.msra.mxu0 0.0
        %561 = vmatpush.msra.mxu0 0.0
        %562 = vmatpush.msra.mxu0 0.0
        %563 = vmatpush.msra.mxu0 0.0
        %564 = vmatpush.msra.mxu0 0.0
        %565 = vmatpush.msra.mxu0 0.0
        %566 = vmatpush.msra.mxu0 0.0
        %567 = vmatpush.msra.mxu0 0.0
        %568 = vmatpush.msra.mxu0 0.0
        %569 = vmatpush.msra.mxu0 0.0
        %570 = vmatpush.msra.mxu0 0.0
        %571 = vmatpush.msra.mxu0 0.0
        %572 = vmatpush.msra.mxu0 0.0
        %573 = vmatpush.msra.mxu0 0.0
        %574 = vmatpush.msra.mxu0 %v534
        %575 = vmatmul.f32.gmra.mxu0 %v536
        %v576 = vpop.f32.mrf.mxu0
        %v577 = vadd.f32 0.0, %v576
        %578 = vmatmul.f32.gmra.mxu0 %v539
        %v579 = vpop.f32.mrf.mxu0
        %v580 = vadd.f32 0.0, %v579
        %581 = vmatmul.f32.gmra.mxu0 %v542
        %v582 = vpop.f32.mrf.mxu0
        %v583 = vadd.f32 0.0, %v582
        %584 = vmatmul.f32.gmra.mxu0 %v545
        %v585 = vpop.f32.mrf.mxu0
        %v586 = vadd.f32 0.0, %v585
        %587 = vmatmul.f32.gmra.mxu0 %v548
        %v588 = vpop.f32.mrf.mxu0
        %v589 = vadd.f32 0.0, %v588
        %590 = vmatmul.f32.gmra.mxu0 %v551
        %v591 = vpop.f32.mrf.mxu0
        %v592 = vadd.f32 0.0, %v591
        %593 = vmatmul.f32.gmra.mxu0 %v554
        %v594 = vpop.f32.mrf.mxu0
        %v595 = vadd.f32 0.0, %v594
        %596 = vmatmul.f32.gmra.mxu0 %v557
        %v597 = vpop.f32.mrf.mxu0
        %v598 = vadd.f32 0.0, %v597
        %599 = vdwg.mxu0
        %v600 = vadd.f32 %v514, %v577
        %v601 = vadd.f32 %v515, %v580
        %v602 = vadd.f32 %v516, %v583
        %v603 = vadd.f32 %v517, %v586
        %v604 = vadd.f32 %v518, %v589
        %v605 = vadd.f32 %v519, %v592
        %v606 = vadd.f32 %v520, %v595
        %v607 = vadd.f32 %v521, %v598
        %v608 = vld [vmem:[%s438 + $0x1] sm:$0xff]
        %v609 = vld [vmem:[%s438 + $0x11] sm:$0xff]
        %v610 = vld [vmem:[%s438 + $0x21] sm:$0xff]
        %v611 = vld [vmem:[%s438 + $0x31] sm:$0xff]
        %v612 = vld [vmem:[%s438 + $0x41] sm:$0xff]
        %v613 = vld [vmem:[%s438 + $0x51] sm:$0xff]
        %v614 = vld [vmem:[%s438 + $0x61] sm:$0xff]
        %v615 = vld [vmem:[%s438 + $0x71] sm:$0xff]
        %s616 = scalar_lea.vmem %s1, 40
        %v617 = vld [vmem:[%s616] sm:$0xff]
        %v619 = vsel %vm222, %v608, 0
        %v622 = vsel %vm222, %v609, 0
        %v625 = vsel %vm222, %v610, 0
        %v628 = vsel %vm222, %v611, 0
        %v631 = vsel %vm222, %v612, 0
        %v634 = vsel %vm222, %v613, 0
        %v637 = vsel %vm222, %v614, 0
        %v640 = vsel %vm222, %v615, 0
        %642 = vmatpush.msra.mxu0 0.0
        %643 = vmatpush.msra.mxu0 0.0
        %644 = vmatpush.msra.mxu0 0.0
        %645 = vmatpush.msra.mxu0 0.0
        %646 = vmatpush.msra.mxu0 0.0
        %647 = vmatpush.msra.mxu0 0.0
        %648 = vmatpush.msra.mxu0 0.0
        %649 = vmatpush.msra.mxu0 0.0
        %650 = vmatpush.msra.mxu0 0.0
        %651 = vmatpush.msra.mxu0 0.0
        %652 = vmatpush.msra.mxu0 0.0
        %653 = vmatpush.msra.mxu0 0.0
        %654 = vmatpush.msra.mxu0 0.0
        %655 = vmatpush.msra.mxu0 0.0
        %656 = vmatpush.msra.mxu0 0.0
        %657 = vmatpush.msra.mxu0 %v617
        %658 = vmatmul.f32.gmra.mxu0 %v619
        %v659 = vpop.f32.mrf.mxu0
        %v660 = vadd.f32 0.0, %v659
        %661 = vmatmul.f32.gmra.mxu0 %v622
        %v662 = vpop.f32.mrf.mxu0
        %v663 = vadd.f32 0.0, %v662
        %664 = vmatmul.f32.gmra.mxu0 %v625
        %v665 = vpop.f32.mrf.mxu0
        %v666 = vadd.f32 0.0, %v665
        %667 = vmatmul.f32.gmra.mxu0 %v628
        %v668 = vpop.f32.mrf.mxu0
        %v669 = vadd.f32 0.0, %v668
        %670 = vmatmul.f32.gmra.mxu0 %v631
        %v671 = vpop.f32.mrf.mxu0
        %v672 = vadd.f32 0.0, %v671
        %673 = vmatmul.f32.gmra.mxu0 %v634
        %v674 = vpop.f32.mrf.mxu0
        %v675 = vadd.f32 0.0, %v674
        %676 = vmatmul.f32.gmra.mxu0 %v637
        %v677 = vpop.f32.mrf.mxu0
        %v678 = vadd.f32 0.0, %v677
        %679 = vmatmul.f32.gmra.mxu0 %v640
        %v680 = vpop.f32.mrf.mxu0
        %v681 = vadd.f32 0.0, %v680
        %682 = vdwg.mxu0
        %v683 = vadd.f32 %v600, %v660
        %v684 = vadd.f32 %v601, %v663
        %v685 = vadd.f32 %v602, %v666
        %v686 = vadd.f32 %v603, %v669
        %v687 = vadd.f32 %v604, %v672
        %v688 = vadd.f32 %v605, %v675
        %v689 = vadd.f32 %v606, %v678
        %v690 = vadd.f32 %v607, %v681
        %s691 = sadd.s32 %s197, 1
        %s692 = smul.u32 %s691, 16
        %s693 = scalar_lea.vmem %s195, %s692
        %v694 = vld [vmem:[%s693] sm:$0xff]
        %v695 = vld [vmem:[%s693 + $0x10] sm:$0xff]
        %v696 = vld [vmem:[%s693 + $0x20] sm:$0xff]
        %v697 = vld [vmem:[%s693 + $0x30] sm:$0xff]
        %v698 = vld [vmem:[%s693 + $0x40] sm:$0xff]
        %v699 = vld [vmem:[%s693 + $0x50] sm:$0xff]
        %v700 = vld [vmem:[%s693 + $0x60] sm:$0xff]
        %v701 = vld [vmem:[%s693 + $0x70] sm:$0xff]
        %s702 = scalar_lea.vmem %s1, 48
        %v703 = vld [vmem:[%s702] sm:$0xff]
        %v705 = vsel %vm222, %v694, 0
        %v708 = vsel %vm222, %v695, 0
        %v711 = vsel %vm222, %v696, 0
        %v714 = vsel %vm222, %v697, 0
        %v717 = vsel %vm222, %v698, 0
        %v720 = vsel %vm222, %v699, 0
        %v723 = vsel %vm222, %v700, 0
        %v726 = vsel %vm222, %v701, 0
        %728 = vmatpush.msra.mxu0 0.0
        %729 = vmatpush.msra.mxu0 0.0
        %730 = vmatpush.msra.mxu0 0.0
        %731 = vmatpush.msra.mxu0 0.0
        %732 = vmatpush.msra.mxu0 0.0
        %733 = vmatpush.msra.mxu0 0.0
        %734 = vmatpush.msra.mxu0 0.0
        %735 = vmatpush.msra.mxu0 0.0
        %736 = vmatpush.msra.mxu0 0.0
        %737 = vmatpush.msra.mxu0 0.0
        %738 = vmatpush.msra.mxu0 0.0
        %739 = vmatpush.msra.mxu0 0.0
        %740 = vmatpush.msra.mxu0 0.0
        %741 = vmatpush.msra.mxu0 0.0
        %742 = vmatpush.msra.mxu0 0.0
        %743 = vmatpush.msra.mxu0 %v703
        %744 = vmatmul.f32.gmra.mxu0 %v705
        %v745 = vpop.f32.mrf.mxu0
        %v746 = vadd.f32 0.0, %v745
        %747 = vmatmul.f32.gmra.mxu0 %v708
        %v748 = vpop.f32.mrf.mxu0
        %v749 = vadd.f32 0.0, %v748
        %750 = vmatmul.f32.gmra.mxu0 %v711
        %v751 = vpop.f32.mrf.mxu0
        %v752 = vadd.f32 0.0, %v751
        %753 = vmatmul.f32.gmra.mxu0 %v714
        %v754 = vpop.f32.mrf.mxu0
        %v755 = vadd.f32 0.0, %v754
        %756 = vmatmul.f32.gmra.mxu0 %v717
        %v757 = vpop.f32.mrf.mxu0
        %v758 = vadd.f32 0.0, %v757
        %759 = vmatmul.f32.gmra.mxu0 %v720
        %v760 = vpop.f32.mrf.mxu0
        %v761 = vadd.f32 0.0, %v760
        %762 = vmatmul.f32.gmra.mxu0 %v723
        %v763 = vpop.f32.mrf.mxu0
        %v764 = vadd.f32 0.0, %v763
        %765 = vmatmul.f32.gmra.mxu0 %v726
        %v766 = vpop.f32.mrf.mxu0
        %v767 = vadd.f32 0.0, %v766
        %768 = vdwg.mxu0
        %v769 = vadd.f32 %v683, %v746
        %v770 = vadd.f32 %v684, %v749
        %v771 = vadd.f32 %v685, %v752
        %v772 = vadd.f32 %v686, %v755
        %v773 = vadd.f32 %v687, %v758
        %v774 = vadd.f32 %v688, %v761
        %v775 = vadd.f32 %v689, %v764
        %v776 = vadd.f32 %v690, %v767
        %s777 = sadd.s32 %s197, 10
        %s778 = smul.u32 %s777, 16
        %s779 = scalar_lea.vmem %s195, %s778
        %v780 = vld [vmem:[%s779] sm:$0xff]
        %v781 = vld [vmem:[%s779 + $0x10] sm:$0xff]
        %v782 = vld [vmem:[%s779 + $0x20] sm:$0xff]
        %v783 = vld [vmem:[%s779 + $0x30] sm:$0xff]
        %v784 = vld [vmem:[%s779 + $0x40] sm:$0xff]
        %v785 = vld [vmem:[%s779 + $0x50] sm:$0xff]
        %v786 = vld [vmem:[%s779 + $0x60] sm:$0xff]
        %v787 = vld [vmem:[%s779 + $0x70] sm:$0xff]
        %s788 = scalar_lea.vmem %s1, 56
        %v789 = vld [vmem:[%s788] sm:$0xff]
        %v791 = vsel %vm222, %v780, 0
        %v794 = vsel %vm222, %v781, 0
        %v797 = vsel %vm222, %v782, 0
        %v800 = vsel %vm222, %v783, 0
        %v803 = vsel %vm222, %v784, 0
        %v806 = vsel %vm222, %v785, 0
        %v809 = vsel %vm222, %v786, 0
        %v812 = vsel %vm222, %v787, 0
        %814 = vmatpush.msra.mxu0 0.0
        %815 = vmatpush.msra.mxu0 0.0
        %816 = vmatpush.msra.mxu0 0.0
        %817 = vmatpush.msra.mxu0 0.0
        %818 = vmatpush.msra.mxu0 0.0
        %819 = vmatpush.msra.mxu0 0.0
        %820 = vmatpush.msra.mxu0 0.0
        %821 = vmatpush.msra.mxu0 0.0
        %822 = vmatpush.msra.mxu0 0.0
        %823 = vmatpush.msra.mxu0 0.0
        %824 = vmatpush.msra.mxu0 0.0
        %825 = vmatpush.msra.mxu0 0.0
        %826 = vmatpush.msra.mxu0 0.0
        %827 = vmatpush.msra.mxu0 0.0
        %828 = vmatpush.msra.mxu0 0.0
        %829 = vmatpush.msra.mxu0 %v789
        %830 = vmatmul.f32.gmra.mxu0 %v791
        %v831 = vpop.f32.mrf.mxu0
        %v832 = vadd.f32 0.0, %v831
        %833 = vmatmul.f32.gmra.mxu0 %v794
        %v834 = vpop.f32.mrf.mxu0
        %v835 = vadd.f32 0.0, %v834
        %836 = vmatmul.f32.gmra.mxu0 %v797
        %v837 = vpop.f32.mrf.mxu0
        %v838 = vadd.f32 0.0, %v837
        %839 = vmatmul.f32.gmra.mxu0 %v800
        %v840 = vpop.f32.mrf.mxu0
        %v841 = vadd.f32 0.0, %v840
        %842 = vmatmul.f32.gmra.mxu0 %v803
        %v843 = vpop.f32.mrf.mxu0
        %v844 = vadd.f32 0.0, %v843
        %845 = vmatmul.f32.gmra.mxu0 %v806
        %v846 = vpop.f32.mrf.mxu0
        %v847 = vadd.f32 0.0, %v846
        %848 = vmatmul.f32.gmra.mxu0 %v809
        %v849 = vpop.f32.mrf.mxu0
        %v850 = vadd.f32 0.0, %v849
        %851 = vmatmul.f32.gmra.mxu0 %v812
        %v852 = vpop.f32.mrf.mxu0
        %v853 = vadd.f32 0.0, %v852
        %854 = vdwg.mxu0
        %v855 = vadd.f32 %v769, %v832
        %v856 = vadd.f32 %v770, %v835
        %v857 = vadd.f32 %v771, %v838
        %v858 = vadd.f32 %v772, %v841
        %v859 = vadd.f32 %v773, %v844
        %v860 = vadd.f32 %v774, %v847
        %v861 = vadd.f32 %v775, %v850
        %v862 = vadd.f32 %v776, %v853
        %v863 = vld [vmem:[%s693 + $0x1] sm:$0xff]
        %v864 = vld [vmem:[%s693 + $0x11] sm:$0xff]
        %v865 = vld [vmem:[%s693 + $0x21] sm:$0xff]
        %v866 = vld [vmem:[%s693 + $0x31] sm:$0xff]
        %v867 = vld [vmem:[%s693 + $0x41] sm:$0xff]
        %v868 = vld [vmem:[%s693 + $0x51] sm:$0xff]
        %v869 = vld [vmem:[%s693 + $0x61] sm:$0xff]
        %v870 = vld [vmem:[%s693 + $0x71] sm:$0xff]
        %s871 = scalar_lea.vmem %s1, 64
        %v872 = vld [vmem:[%s871] sm:$0xff]
        %v874 = vsel %vm222, %v863, 0
        %v877 = vsel %vm222, %v864, 0
        %v880 = vsel %vm222, %v865, 0
        %v883 = vsel %vm222, %v866, 0
        %v886 = vsel %vm222, %v867, 0
        %v889 = vsel %vm222, %v868, 0
        %v892 = vsel %vm222, %v869, 0
        %v895 = vsel %vm222, %v870, 0
        %897 = vmatpush.msra.mxu0 0.0
        %898 = vmatpush.msra.mxu0 0.0
        %899 = vmatpush.msra.mxu0 0.0
        %900 = vmatpush.msra.mxu0 0.0
        %901 = vmatpush.msra.mxu0 0.0
        %902 = vmatpush.msra.mxu0 0.0
        %903 = vmatpush.msra.mxu0 0.0
        %904 = vmatpush.msra.mxu0 0.0
        %905 = vmatpush.msra.mxu0 0.0
        %906 = vmatpush.msra.mxu0 0.0
        %907 = vmatpush.msra.mxu0 0.0
        %908 = vmatpush.msra.mxu0 0.0
        %909 = vmatpush.msra.mxu0 0.0
        %910 = vmatpush.msra.mxu0 0.0
        %911 = vmatpush.msra.mxu0 0.0
        %912 = vmatpush.msra.mxu0 %v872
        %913 = vmatmul.f32.gmra.mxu0 %v874
        %v914 = vpop.f32.mrf.mxu0
        %v915 = vadd.f32 0.0, %v914
        %916 = vmatmul.f32.gmra.mxu0 %v877
        %v917 = vpop.f32.mrf.mxu0
        %v918 = vadd.f32 0.0, %v917
        %919 = vmatmul.f32.gmra.mxu0 %v880
        %v920 = vpop.f32.mrf.mxu0
        %v921 = vadd.f32 0.0, %v920
        %922 = vmatmul.f32.gmra.mxu0 %v883
        %v923 = vpop.f32.mrf.mxu0
        %v924 = vadd.f32 0.0, %v923
        %925 = vmatmul.f32.gmra.mxu0 %v886
        %v926 = vpop.f32.mrf.mxu0
        %v927 = vadd.f32 0.0, %v926
        %928 = vmatmul.f32.gmra.mxu0 %v889
        %v929 = vpop.f32.mrf.mxu0
        %v930 = vadd.f32 0.0, %v929
        %931 = vmatmul.f32.gmra.mxu0 %v892
        %v932 = vpop.f32.mrf.mxu0
        %v933 = vadd.f32 0.0, %v932
        %934 = vmatmul.f32.gmra.mxu0 %v895
        %v935 = vpop.f32.mrf.mxu0
        %v936 = vadd.f32 0.0, %v935
        %937 = vdwg.mxu0
        %v938 = vadd.f32 %v855, %v915
        %v939 = vadd.f32 %v856, %v918
        %v940 = vadd.f32 %v857, %v921
        %v941 = vadd.f32 %v858, %v924
        %v942 = vadd.f32 %v859, %v927
        %v943 = vadd.f32 %v860, %v930
        %v944 = vadd.f32 %v861, %v933
        %v945 = vadd.f32 %v862, %v936
        %946 = vst [vmem:[%s183] sm:$0xff] %v938
        %947 = vst [vmem:[%s183 + $0x8] sm:$0xff] %v939
        %948 = vst [vmem:[%s183 + $0x10] sm:$0xff] %v940
        %949 = vst [vmem:[%s183 + $0x18] sm:$0xff] %v941
        %950 = vst [vmem:[%s183 + $0x20] sm:$0xff] %v942
        %951 = vst [vmem:[%s183 + $0x28] sm:$0xff] %v943
        %952 = vst [vmem:[%s183 + $0x30] sm:$0xff] %v944
        %953 = vst [vmem:[%s183 + $0x38] sm:$0xff] %v945
        %v954 = vadd.f32 %v938, %v939
        %v955 = vadd.f32 %v954, %v940
        %v956 = vadd.f32 %v955, %v941
        %v957 = vadd.f32 %v956, %v942
        %v958 = vadd.f32 %v957, %v943
        %v959 = vadd.f32 %v958, %v944
        %v960 = vadd.f32 %v959, %v945
        %v961 = vrot.slane %v960, 4
        %v962 = vadd.f32 %v960, %v961
        %v963 = vrot.slane %v962, 2
        %v964 = vadd.f32 %v962, %v963
        %v965 = vrot.slane %v964, 1
        %v966 = vadd.f32 %v964, %v965
        %v967 = vmul.f32 %v938, %v938
        %v968 = vmul.f32 %v939, %v939
        %v969 = vmul.f32 %v940, %v940
        %v970 = vmul.f32 %v941, %v941
        %v971 = vmul.f32 %v942, %v942
        %v972 = vmul.f32 %v943, %v943
        %v973 = vmul.f32 %v944, %v944
        %v974 = vmul.f32 %v945, %v945
        %v975 = vadd.f32 %v967, %v968
        %v976 = vadd.f32 %v975, %v969
        %v977 = vadd.f32 %v976, %v970
        %v978 = vadd.f32 %v977, %v971
        %v979 = vadd.f32 %v978, %v972
        %v980 = vadd.f32 %v979, %v973
        %v981 = vadd.f32 %v980, %v974
        %v982 = vrot.slane %v981, 4
        %v983 = vadd.f32 %v981, %v982
        %v984 = vrot.slane %v983, 2
        %v985 = vadd.f32 %v983, %v984
        %v986 = vrot.slane %v985, 1
        %v987 = vadd.f32 %v985, %v986
        %vm988 = vcmask 1040384
        %v989 = vsel %vm988, %v966, %v987
        %990 = vst [vmem:[%s190] sm:$0x3] %v989
        %s991 = sand.u32 %s90, 1
        %s992 = scalar_lea.sflag [#allocation3], %s991
        %s993 = sand.u32 %s90, 1
        %s994 = smul.addr %s993, 64
        %s995 = scalar_lea.vmem [#allocation2], %s994
        %s996 = sand.u32 %s118, 1
        %s997 = scalar_lea.sflag [#allocation5], %s996
        %s998 = sand.u32 %s118, 1
        %s999 = smul.addr %s998, 2
        %s1000 = scalar_lea.vmem [#allocation4], %s999
        // Predicated region
        $region29: #{tpu_custom_call.1} parent=27 // pred_check
          %p1001 = pneg %p100
        $region30: #{tpu_custom_call.1} parent=27 // pred_check_branch
          %1003 = sbr.rel (%p1001) target = $region32
        $region31: #{tpu_custom_call.1} parent=27 // pred_region
          %s1004 = smul.u32 8, %s26
          %1006 = vsyncadd %s992, 0
          %s1007 = smul.addr %s25, 8
          %s1008 = sadd.s32 %s1004, %s1007
          %s1009 = smul.addr %s1008, 8
          %s1010 = scalar_lea.hbm %s2, %s1009
          %s1011 = sshll.u32 %s995, 4
          %s1012 = int_to_ptr.vmem [resolvable:$true] %s1011
          %s1013 = sshll.u32 %s1010, 4
          %s1014 = int_to_ptr.hbm [resolvable:$true] %s1013
          %1019 = dma.vmem_to_hbm [thread:$0]  %s1012, 1024, %s1014, %s992, 128, 128, 8
        $region32: #{tpu_custom_call.1} parent=27 // pred_fallthru
          _
        // Predicated region
        $region33: #{tpu_custom_call.1} parent=27 // pred_check
          %p1020 = pneg %p128
        $region34: #{tpu_custom_call.1} parent=27 // pred_check_branch
          %1022 = sbr.rel (%p1020) target = $region36
        $region35: #{tpu_custom_call.1} parent=27 // pred_region
          %1024 = vsyncadd %s997, 0
          %s1025 = sadd.s32 %s26, %s25
          %s1026 = smul.addr %s1025, 2
          %s1027 = scalar_lea.hbm %s3, %s1026
          %s1029 = sshll.u32 %s1000, 4
          %s1030 = int_to_ptr.vmem [resolvable:$true] %s1029
          %s1031 = sshll.u32 %s1027, 4
          %s1032 = int_to_ptr.hbm [resolvable:$true] %s1031
          %1034 = dma.vmem_to_hbm [thread:$0]  %s1030, 32, %s1032, %s997
        $region36: #{tpu_custom_call.1} parent=27 // pred_fallthru
          _
      $region28: #{tpu_custom_call.1} parent=5 // pred_fallthru
        _
      %p1035 = scmp.le.s32.totalorder 2, %s16
      // Predicated region
      $region37: #{tpu_custom_call.1} parent=5 // pred_check
        %p1036 = pneg %p1035
      $region38: #{tpu_custom_call.1} parent=5 // pred_check_branch
        %1038 = sbr.rel (%p1036) target = $region40
      $region39: #{tpu_custom_call.1} parent=5 // pred_region
        %s1039 = ssub.s32 %s16, 2
        // Predicated region
        $region41: #{tpu_custom_call.1} parent=39 // pred_check
          %p1040 = pneg %p106
        $region42: #{tpu_custom_call.1} parent=39 // pred_check_branch
          %1042 = sbr.rel (%p1040) target = $region44
        $region43: #{tpu_custom_call.1} parent=39 // pred_region
          %s1043 = sand.u32 %s91, 1
          %s1044 = scalar_lea.sflag [#allocation3], %s1043
          %s1045 = sand.u32 %s91, 1
          %s1046 = smul.addr %s1045, 64
          %s1047 = scalar_lea.vmem [#allocation2], %s1046
          %1049 = dma.done %s1044, 1024
        $region44: #{tpu_custom_call.1} parent=39 // pred_fallthru
          _
        // Predicated region
        $region45: #{tpu_custom_call.1} parent=39 // pred_check
          %p1050 = pneg %p134
        $region46: #{tpu_custom_call.1} parent=39 // pred_check_branch
          %1052 = sbr.rel (%p1050) target = $region48
        $region47: #{tpu_custom_call.1} parent=39 // pred_region
          %s1053 = sand.u32 %s119, 1
          %s1054 = scalar_lea.sflag [#allocation5], %s1053
          %s1055 = sand.u32 %s119, 1
          %s1056 = smul.addr %s1055, 2
          %s1057 = scalar_lea.vmem [#allocation4], %s1056
          %1059 = dma.done %s1054, 32
        $region48: #{tpu_custom_call.1} parent=39 // pred_fallthru
          _
      $region40: #{tpu_custom_call.1} parent=5 // pred_fallthru
        _
    $region6: #{tpu_custom_call.1} parent=1 // loop_footer
      %s20 = sadd.s32 1, %s16
    $region7: #{tpu_custom_call.1} parent=1 // loop_footer_branch
      %15 = sbr.rel target = $region3
    $region8: #{tpu_custom_call.1} parent=1 // loop_exit
      _
    %1060 = vsyncpa [#allocation3], 1
    %s1061 = scalar_lea.sflag [#allocation3], 1
    %1062 = vsyncpa %s1061, 1
    %1063 = vsyncpa [#allocation5], 1
    %s1064 = scalar_lea.sflag [#allocation5], 1
    %1065 = vsyncpa %s1064, 1

</llo_original>
